<compile_context>
chip_gen: v5e
topology: v5e:2x2
jax: 0.10.0
libtpu: 0.0.40
codegen_flags: <defaults>
</compile_context>

<pallas_src>
import jax
import jax.numpy as jnp
from jax import lax
from jax.experimental import pallas as pl
from jax.experimental.pallas import tpu as pltpu

BN_EPS = 1e-5


# ---------------------------------------------------------------------------
# Standalone per-channel batch statistics (sum, sum of squares over N, H*W).
# Only needed for the ORIGINAL block input; later layers' stats come fused out
# of the conv kernel itself.
# ---------------------------------------------------------------------------
def _input_stats_kernel(x_ref, sum_ref, sq_ref):
    @pl.when(pl.program_id(0) == 0)
    def _init():
        sum_ref[...] = jnp.zeros_like(sum_ref)
        sq_ref[...] = jnp.zeros_like(sq_ref)

    x = x_ref[...].astype(jnp.float32)                     # (C, H*W)
    sum_ref[...] = sum_ref[...] + jnp.sum(x, axis=1, keepdims=True)
    sq_ref[...] = sq_ref[...] + jnp.sum(x * x, axis=1, keepdims=True)


def input_channel_stats(x):
    """x: (N, C, H*W) -> per-channel (sum, sumsq) over (N, H*W), each (C, 1) f32."""
    N, C, HW = x.shape
    return pl.pallas_call(
        _input_stats_kernel,
        grid=(N,),
        in_specs=[pl.BlockSpec((None, C, HW), lambda n: (n, 0, 0))],
        out_specs=(pl.BlockSpec((C, 1), lambda n: (0, 0)),
                   pl.BlockSpec((C, 1), lambda n: (0, 0))),
        out_shape=(jax.ShapeDtypeStruct((C, 1), jnp.float32),
                   jax.ShapeDtypeStruct((C, 1), jnp.float32)),
        compiler_params=pltpu.CompilerParams(dimension_semantics=("arbitrary",)),
    )(x)


# ---------------------------------------------------------------------------
# One dense layer: folded BN -> ReLU -> 3x3 conv (pad=1). Emits ONLY the new
# growth channels, plus their (sum, sumsq) statistics for the next layer's BN.
# ---------------------------------------------------------------------------
def _make_dense_layer_kernel(num_feats, H, W):
    HW = H * W
    LPAD = max(128, ((W + 1 + 127) // 128) * 128)   # lane-aligned left halo, >= W + 1
    RPAD = W + 1                                    # right halo

    def kernel(*args):
        feat_refs = args[:num_feats]
        scale_ref, shift_ref, w_ref, b_ref, mask_ref = args[num_feats:num_feats + 5]
        out_ref, sum_ref, sq_ref = args[num_feats + 5:num_feats + 8]
        ypad_ref = args[num_feats + 8]              # VMEM scratch (Cin, LPAD+HW+RPAD) f32

        cin = ypad_ref.shape[0]

        @pl.when(pl.program_id(0) == 0)
        def _init():
            # Stat accumulators stay resident across the batch grid axis.
            sum_ref[...] = jnp.zeros_like(sum_ref)
            sq_ref[...] = jnp.zeros_like(sq_ref)
            # Zero the halo ONCE per pallas_call; the interior is fully rewritten
            # every grid step and the halo is never touched again.
            ypad_ref[:, 0:LPAD] = jnp.zeros((cin, LPAD), jnp.float32)
            ypad_ref[:, LPAD + HW:LPAD + HW + RPAD] = jnp.zeros((cin, RPAD), jnp.float32)

        # Folded BatchNorm + ReLU per dense-input group, written straight into the
        # padded scratch interior (lane offset LPAD is 128-aligned -> unmasked lanes).
        off = 0
        for fr in feat_refs:
            c = fr.shape[0]
            sc = scale_ref[off:off + c, :]
            sh = shift_ref[off:off + c, :]
            yg = jnp.maximum(fr[...].astype(jnp.float32) * sc + sh, 0.0)
            ypad_ref[off:off + c, LPAD:LPAD + HW] = yg
            off += c

        # One f32 -> bf16 cast for all MXU operands.
        y = ypad_ref[...].astype(jnp.bfloat16)       # (Cin, LPAD + HW + RPAD)
        m_left = mask_ref[0:1, :]                    # 1.0 where col >= 1      (used for dx = -1)
        m_right = mask_ref[1:2, :]                   # 1.0 where col <= W - 2  (used for dx = +1)

        w_all = w_ref[...]                           # (9, Cout, Cin) bf16
        cout = w_all.shape[1]

        # 3x3 conv as 9 accumulated MXU dots; H*W is the lane / MXU-N dimension.
        # Row under/overflow is handled by the zero halos; column wrap-around by the masks.
        acc = jnp.zeros((cout, HW), jnp.float32)
        for dy in (-1, 0, 1):
            for dx in (-1, 0, 1):
                start = LPAD + dy * W + dx
                win = y[:, start:start + HW]         # (Cin, HW) shifted window
                if dx == -1:
                    win = win * m_left
                elif dx == 1:
                    win = win * m_right
                tap = (dy + 1) * 3 + (dx + 1)
                acc = acc + jnp.dot(w_all[tap], win, preferred_element_type=jnp.float32)
        acc = acc + b_ref[...]

        # New growth channels: a single lane-dense (Cout, HW) store, written once per layer.
        out_ref[...] = acc.astype(out_ref.dtype)

        # Fused BN statistics of the fresh channels for the NEXT layer
        # (saves a full HBM read pass over the feature map per layer).
        sum_ref[...] = sum_ref[...] + jnp.sum(acc, axis=1, keepdims=True)
        sq_ref[...] = sq_ref[...] + jnp.sum(acc * acc, axis=1, keepdims=True)

    return kernel, LPAD, RPAD


def dense_layer_apply(feats, scale, shift, w_t, b2, masks, H, W):
    """feats: list of (N, C_i, H*W).  Returns (y_new (N,Cout,H*W), sum (Cout,1), sq (Cout,1))."""
    N = feats[0].shape[0]
    HW = H * W
    Cin = scale.shape[0]
    Cout = w_t.shape[1]
    num_feats = len(feats)
    kernel, LPAD, RPAD = _make_dense_layer_kernel(num_feats, H, W)

    in_specs = [pl.BlockSpec((None, f.shape[1], HW), lambda n: (n, 0, 0)) for f in feats]
    in_specs += [
        pl.BlockSpec((Cin, 1), lambda n: (0, 0)),            # folded BN scale
        pl.BlockSpec((Cin, 1), lambda n: (0, 0)),            # folded BN shift
        pl.BlockSpec((9, Cout, Cin), lambda n: (0, 0, 0)),   # conv weights (tap, Cout, Cin)
        pl.BlockSpec((Cout, 1), lambda n: (0, 0)),           # conv bias
        pl.BlockSpec((2, HW), lambda n: (0, 0)),             # column wrap-around masks
    ]
    out_specs = (
        pl.BlockSpec((None, Cout, HW), lambda n: (n, 0, 0)),
        pl.BlockSpec((Cout, 1), lambda n: (0, 0)),
        pl.BlockSpec((Cout, 1), lambda n: (0, 0)),
    )
    out_shape = (
        jax.ShapeDtypeStruct((N, Cout, HW), feats[0].dtype),
        jax.ShapeDtypeStruct((Cout, 1), jnp.float32),
        jax.ShapeDtypeStruct((Cout, 1), jnp.float32),
    )
    return pl.pallas_call(
        kernel,
        grid=(N,),
        in_specs=in_specs,
        out_specs=out_specs,
        out_shape=out_shape,
        scratch_shapes=[pltpu.VMEM((Cin, LPAD + HW + RPAD), jnp.float32)],
        compiler_params=pltpu.CompilerParams(dimension_semantics=("arbitrary",)),
    )(*feats, scale, shift, w_t, b2, masks)


def init_dense_block_params(key, num_convs, num_channels, in_channels):
    """Deterministic parameter init matching the module's shapes (HWIO conv weights)."""
    params = []
    cin = in_channels
    for _ in range(num_convs):
        key, kw, kb = jax.random.split(key, 3)
        gamma = jnp.ones((cin,), jnp.float32)          # BN weight init = 1
        beta = jnp.zeros((cin,), jnp.float32)          # BN bias init = 0
        bound = 1.0 / ((cin * 9) ** 0.5)
        w = jax.random.uniform(kw, (3, 3, cin, num_channels), jnp.float32,
                               minval=-bound, maxval=bound)
        b = jax.random.uniform(kb, (num_channels,), jnp.float32,
                               minval=-bound, maxval=bound)
        params.append((gamma, beta, w, b))
        cin += num_channels
    return params


def dense_block_forward(x_nchw, params):
    """DenseBlock.forward: per layer Y = conv_block(X), X = cat([X, Y], channel)."""
    N, C0, H, W = x_nchw.shape
    HW = H * W
    x0 = x_nchw.reshape(N, C0, HW)          # channels on sublanes, flattened spatial on lanes

    # {0,1} column masks for the flattened-spatial shift trick (shared by all layers).
    col = jnp.arange(HW, dtype=jnp.int32) % W
    masks = jnp.stack([(col >= 1), (col <= W - 2)], axis=0).astype(jnp.bfloat16)  # (2, HW)

    sum0, sq0 = input_channel_stats(x0)
    feats, sums, sqs = [x0], [sum0], [sq0]
    count = float(N * HW)

    for (gamma, beta, w, b) in params:
        cin = sum(int(f.shape[1]) for f in feats)
        cout = w.shape[-1]

        # Fold training-mode BN (biased variance, eps=1e-5) into per-channel scale/shift.
        all_sum = jnp.concatenate(sums, axis=0)                 # (Cin, 1)
        all_sq = jnp.concatenate(sqs, axis=0)
        mean = all_sum / count
        var = jnp.maximum(all_sq / count - mean * mean, 0.0)
        inv = lax.rsqrt(var + BN_EPS)
        scale = gamma.reshape(cin, 1) * inv
        shift = beta.reshape(cin, 1) - mean * scale

        # HWIO (3,3,Cin,Cout) -> (tap = ky*3+kx, Cout, Cin) bf16 for the re-oriented dots.
        w_t = jnp.transpose(w.reshape(9, cin, cout), (0, 2, 1)).astype(jnp.bfloat16)
        b2 = b.reshape(cout, 1).astype(jnp.float32)

        y, s_new, q_new = dense_layer_apply(feats, scale, shift, w_t, b2, masks, H, W)
        feats.append(y)
        sums.append(s_new)
        sqs.append(q_new)

    out = jnp.concatenate(feats, axis=1)    # one O(C_final) concat; each channel written once
    return out.reshape(N, -1, H, W)         # already NCHW


def _reference_forward(x_nchw, params):
    """Pure-JAX f32 reference mirroring the PyTorch module (for sanity check)."""
    x = x_nchw
    for (gamma, beta, w, b) in params:
        mean = jnp.mean(x, axis=(0, 2, 3), keepdims=True)
        var = jnp.mean((x - mean) ** 2, axis=(0, 2, 3), keepdims=True)
        y = (x - mean) / jnp.sqrt(var + BN_EPS)
        y = y * gamma.reshape(1, -1, 1, 1) + beta.reshape(1, -1, 1, 1)
        y = jnp.maximum(y, 0.0)
        w_oihw = jnp.transpose(w, (3, 2, 0, 1))
        y = lax.conv_general_dilated(
            y, w_oihw, window_strides=(1, 1), padding=((1, 1), (1, 1)),
            dimension_numbers=('NCHW', 'OIHW', 'NCHW'))
        y = y + b.reshape(1, -1, 1, 1)
        x = jnp.concatenate([x, y], axis=1)
    return x


if __name__ == "__main__":
    key = jax.random.PRNGKey(0)
    k_x, k_p = jax.random.split(key)

    # Small shapes consistent with the module: batch=2, in_channels=4, spatial=16.
    num_convs, num_channels = 2, 8
    x = jax.random.normal(k_x, (2, 4, 16, 16), jnp.float32)   # NCHW like PyTorch

    params = init_dense_block_params(k_p, num_convs, num_channels, in_channels=4)

    out = jax.block_until_ready(dense_block_forward(x, params))

    # Sanity check against the pure-JAX f32 reference of the PyTorch forward.
    ref = jax.block_until_ready(_reference_forward(x, params))
    assert out.shape == (2, 4 + num_convs * num_channels, 16, 16), out.shape
    # Tolerance accounts for bf16 MXU inputs (f32 accumulation) vs. pure-f32 reference.
    assert jnp.allclose(out, ref, atol=5e-2, rtol=5e-2), float(jnp.abs(out - ref).max())

    print("KERNEL_OK")
</pallas_src>

<mosaic_0001>
module attributes {stable_mosaic.version = 11 : i64} {
  func.func @_input_stats_kernel(%arg0: i32, %arg1: memref<1x4x256xf32, #tpu.memory_space<vmem>>, %arg2: memref<4x1xf32, #tpu.memory_space<vmem>>, %arg3: memref<4x1xf32, #tpu.memory_space<vmem>>) attributes {dimension_semantics = [#tpu.dimension_semantics<arbitrary>], iteration_bounds = array<i64: 2>, scalar_prefetch = 0 : i64, scratch_operands = 0 : i64, tpu.core_type = #tpu.core_type<tc>, window_params = [{transform_indices = @transform_0, window_bounds = array<i64: 1, 4, 256>}, {pipeline_mode = #tpu.pipeline_mode<synchronous>, transform_indices = @transform_1, window_bounds = array<i64: 4, 1>}, {pipeline_mode = #tpu.pipeline_mode<synchronous>, transform_indices = @transform_2, window_bounds = array<i64: 4, 1>}]} {
    %c0_i32 = arith.constant 0 : i32
    %0 = arith.cmpi eq, %arg0, %c0_i32 : i32
    %1 = arith.extui %0 : i1 to i32
    %c0_i32_0 = arith.constant 0 : i32
    %2 = arith.cmpi ne, %1, %c0_i32_0 : i32
    scf.if %2 {
      %cst_12 = arith.constant 0.000000e+00 : f32
      %16 = vector.broadcast %cst_12 : f32 to vector<4x1xf32>
      %c0_13 = arith.constant 0 : index
      %c0_14 = arith.constant 0 : index
      %17 = vector.load %arg2[%c0_13, %c0_14] : memref<4x1xf32, #tpu.memory_space<vmem>>, vector<4x1xf32>
      tpu.vector_store %arg2[%c0_13, %c0_14], %16 {strides = array<i32>} : memref<4x1xf32, #tpu.memory_space<vmem>>, vector<4x1xf32>,
      %cst_15 = arith.constant 0.000000e+00 : f32
      %18 = vector.broadcast %cst_15 : f32 to vector<4x1xf32>
      %c0_16 = arith.constant 0 : index
      %c0_17 = arith.constant 0 : index
      %19 = vector.load %arg3[%c0_16, %c0_17] : memref<4x1xf32, #tpu.memory_space<vmem>>, vector<4x1xf32>
      tpu.vector_store %arg3[%c0_16, %c0_17], %18 {strides = array<i32>} : memref<4x1xf32, #tpu.memory_space<vmem>>, vector<4x1xf32>,
    } else {
    }
    %c0 = arith.constant 0 : index
    %c0_1 = arith.constant 0 : index
    %c0_2 = arith.constant 0 : index
    %3 = vector.load %arg1[%c0, %c0_1, %c0_2] : memref<1x4x256xf32, #tpu.memory_space<vmem>>, vector<1x4x256xf32>
    %4 = vector.shape_cast %3 : vector<1x4x256xf32> to vector<4x256xf32>
    %c0_3 = arith.constant 0 : index
    %c0_4 = arith.constant 0 : index
    %5 = vector.load %arg2[%c0_3, %c0_4] : memref<4x1xf32, #tpu.memory_space<vmem>>, vector<4x1xf32>
    %cst = arith.constant dense<0.000000e+00> : vector<4xf32>
    %6 = vector.multi_reduction <add>, %4, %cst [1] : vector<4x256xf32> to vector<4xf32>
    %7 = vector.shape_cast %6 : vector<4xf32> to vector<4x1xf32>
    %8 = arith.addf %5, %7 : vector<4x1xf32>
    %c0_5 = arith.constant 0 : index
    %c0_6 = arith.constant 0 : index
    %9 = vector.load %arg2[%c0_5, %c0_6] : memref<4x1xf32, #tpu.memory_space<vmem>>, vector<4x1xf32>
    tpu.vector_store %arg2[%c0_5, %c0_6], %8 {strides = array<i32>} : memref<4x1xf32, #tpu.memory_space<vmem>>, vector<4x1xf32>,
    %c0_7 = arith.constant 0 : index
    %c0_8 = arith.constant 0 : index
    %10 = vector.load %arg3[%c0_7, %c0_8] : memref<4x1xf32, #tpu.memory_space<vmem>>, vector<4x1xf32>
    %11 = arith.mulf %4, %4 : vector<4x256xf32>
    %cst_9 = arith.constant dense<0.000000e+00> : vector<4xf32>
    %12 = vector.multi_reduction <add>, %11, %cst_9 [1] : vector<4x256xf32> to vector<4xf32>
    %13 = vector.shape_cast %12 : vector<4xf32> to vector<4x1xf32>
    %14 = arith.addf %10, %13 : vector<4x1xf32>
    %c0_10 = arith.constant 0 : index
    %c0_11 = arith.constant 0 : index
    %15 = vector.load %arg3[%c0_10, %c0_11] : memref<4x1xf32, #tpu.memory_space<vmem>>, vector<4x1xf32>
    tpu.vector_store %arg3[%c0_10, %c0_11], %14 {strides = array<i32>} : memref<4x1xf32, #tpu.memory_space<vmem>>, vector<4x1xf32>,
    return
  }
  func.func @transform_0(%arg0: i32) -> (i32, i32, i32) {
    %c0_i32 = arith.constant 0 : i32
    %c0_i32_0 = arith.constant 0 : i32
    %c0_i32_1 = arith.constant 0 : i32
    return %arg0, %c0_i32, %c0_i32_0 : i32, i32, i32
  }
  func.func @transform_1(%arg0: i32) -> (i32, i32) {
    %c0_i32 = arith.constant 0 : i32
    %c0_i32_0 = arith.constant 0 : i32
    %c0_i32_1 = arith.constant 0 : i32
    return %c0_i32, %c0_i32_0 : i32, i32
  }
  func.func @transform_2(%arg0: i32) -> (i32, i32) {
    %c0_i32 = arith.constant 0 : i32
    %c0_i32_0 = arith.constant 0 : i32
    %c0_i32_1 = arith.constant 0 : i32
    return %c0_i32, %c0_i32_0 : i32, i32
  }
}

</mosaic_0001>

<llo_original>
// kernel: tpu_custom_call.1
$region0: #{tpu_custom_call.1}
  #allocation0 [shape = 'u32[]', space=smem, size = 0x4, offset = 0x4, fixed_abs, tag = 'smem constant byte address 0x4 - core index']
  #allocation1 [shape = 'u32[72,128]{1,0:T(1,128)}', space=vmem, size = 0x9000, scoped, tag = 'internal scratch']
  %s0 = inlined_call_operand.hbm [shape: f32[2,4,256], index: 0, kind: input, shape index: {}]
  %s1 = inlined_call_operand.vmem [shape: f32[4,1], index: 1, kind: output, shape index: {0}]
  %s2 = inlined_call_operand.vmem [shape: f32[4,1], index: 2, kind: output, shape index: {1}]
  %3 = xla_tuple %s1, %s2
  %s4 = sld [smem:[#allocation0]]
  $region53: #{tpu_custom_call.1} parent=0
    _
  %s6 = ssub.s32 1, %s4
  %s7 = scalar_select 0, %s6, %s4
  $region1: #{tpu_custom_call.1} parent=0
    #allocation2 [shape = 'u8[8192]{0}', space=vmem, size = 0x2000, scoped, tag = 'input window, operand 0']
    #allocation3 [shape = 's32[2]{0}', space=sflag, size = 0x8, scoped, tag = 'scoped memory for tpu_custom_call.1']
    %8 = vsyncpa [#allocation3], 0
    %s9 = scalar_lea.sflag [#allocation3], 1
    %10 = vsyncpa %s9, 0
    loop: start=0, step=1, limit=4
    $region2: #{tpu_custom_call.1} parent=1 // loop_pre_header
      _
    $region3: #{tpu_custom_call.1} parent=1 // loop_header
      %s12 = sphi 0, %s16
      %p13 = scmp.ge.s32.totalorder %s12, 4
      %s22 = sphi 0, %s24
      %s25 = sphi 0, %s22
      %s26 = sphi 0, %s25
      %s42 = sphi 0, %s26
      %s46 = sphi 0, %s46
      %s48 = sphi 0, %s46
      %s49 = sphi 0, %s48
      %s63 = sphi 0, %s49
      %s67 = sphi 0, %s67
      %s69 = sphi 0, %s67
      %s70 = sphi 0, %s69
      %s84 = sphi 0, %s70
    $region4: #{tpu_custom_call.1} parent=1 // loop_header_branch
      %15 = sbr.rel (%p13) target = $region8
    $region5: #{tpu_custom_call.1} parent=1 // loop_body
      %s17 = ssub.s32 %s12, 1
      %s18 = ssub.s32 %s12, 2
      %s19 = sadd.s32 %s12, 1
      %s20 = ssub.s32 %s12, %s19
      %p21 = scmp.eq.s32.totalorder %s20, 0
      %s23 = sadd.s32 %s22, 1
      %s24 = scalar_select %p21, %s22, %s23
      %p27 = pneg %p21
      %p28 = scmp.eq.s32.totalorder %s12, 1
      %p29 = por %p27, %p28
      %p30 = scmp.ne.s32.totalorder %s22, %s25
      %p31 = scmp.eq.s32.totalorder %s12, 0
      %p32 = por %p30, %p31
      %p33 = scmp.ne.s32.totalorder %s22, %s25
      %p34 = scmp.eq.s32.totalorder %s17, 1
      %p35 = por %p33, %p34
      %p36 = scmp.ne.s32.totalorder %s25, %s26
      %p37 = scmp.eq.s32.totalorder %s17, 0
      %p38 = por %p36, %p37
      %p39 = scmp.ne.s32.totalorder %s25, %s26
      %p40 = scmp.eq.s32.totalorder %s18, 1
      %p41 = por %p39, %p40
      %p43 = scmp.ne.s32.totalorder %s26, %s42
      %p44 = scmp.eq.s32.totalorder %s18, 0
      %p45 = por %p43, %p44
      %s47 = sadd.s32 %s46, 1
      %p50 = scmp.eq.s32.totalorder %s12, 1
      %p51 = scmp.ne.s32.totalorder %s46, %s48
      %p52 = scmp.eq.s32.totalorder %s12, 0
      %p53 = por %p51, %p52
      %p54 = scmp.ne.s32.totalorder %s46, %s48
      %p55 = scmp.eq.s32.totalorder %s17, 1
      %p56 = por %p54, %p55
      %p57 = scmp.ne.s32.totalorder %s48, %s49
      %p58 = scmp.eq.s32.totalorder %s17, 0
      %p59 = por %p57, %p58
      %p60 = scmp.ne.s32.totalorder %s48, %s49
      %p61 = scmp.eq.s32.totalorder %s18, 1
      %p62 = por %p60, %p61
      %p64 = scmp.ne.s32.totalorder %s49, %s63
      %p65 = scmp.eq.s32.totalorder %s18, 0
      %p66 = por %p64, %p65
      %s68 = sadd.s32 %s67, 1
      %p71 = scmp.eq.s32.totalorder %s12, 1
      %p72 = scmp.ne.s32.totalorder %s67, %s69
      %p73 = scmp.eq.s32.totalorder %s12, 0
      %p74 = por %p72, %p73
      %p75 = scmp.ne.s32.totalorder %s67, %s69
      %p76 = scmp.eq.s32.totalorder %s17, 1
      %p77 = por %p75, %p76
      %p78 = scmp.ne.s32.totalorder %s69, %s70
      %p79 = scmp.eq.s32.totalorder %s17, 0
      %p80 = por %p78, %p79
      %p81 = scmp.ne.s32.totalorder %s69, %s70
      %p82 = scmp.eq.s32.totalorder %s18, 1
      %p83 = por %p81, %p82
      %p85 = scmp.ne.s32.totalorder %s70, %s84
      %p86 = scmp.eq.s32.totalorder %s18, 0
      %p87 = por %p85, %p86
      %p88 = scmp.le.s32.totalorder 1, %s12
      %p89 = scmp.lt.s32.totalorder %s12, 3
      %p90 = pnand %p88, %p89
      %p91 = pneg %p90
      // Predicated region
      $region9: #{tpu_custom_call.1} parent=5 // pred_check
        _
      $region10: #{tpu_custom_call.1} parent=5 // pred_check_branch
        %93 = sbr.rel (%p90) target = $region12
      $region11: #{tpu_custom_call.1} parent=5 // pred_region
        %s94 = ssub.s32 %s12, 1
      $region12: #{tpu_custom_call.1} parent=5 // pred_fallthru
        _
      %p95 = scmp.lt.s32.totalorder %s12, 2
      // Predicated region
      $region13: #{tpu_custom_call.1} parent=5 // pred_check
        %p96 = pneg %p95
      $region14: #{tpu_custom_call.1} parent=5 // pred_check_branch
        %98 = sbr.rel (%p96) target = $region16
      $region15: #{tpu_custom_call.1} parent=5 // pred_region
        // Predicated region
        $region17: #{tpu_custom_call.1} parent=15 // pred_check
          %p99 = pneg %p32
        $region18: #{tpu_custom_call.1} parent=15 // pred_check_branch
          %101 = sbr.rel (%p99) target = $region20
        $region19: #{tpu_custom_call.1} parent=15 // pred_region
          %s102 = sand.u32 %s22, 1
          %s103 = scalar_lea.sflag [#allocation3], %s102
          %s104 = sand.u32 %s22, 1
          %s105 = smul.addr %s104, 8
          %s106 = scalar_lea.vmem [#allocation2], %s105
          %108 = vsyncadd %s103, 0
          %s109 = smul.addr %s12, 2
          %s110 = smul.addr %s109, 4
          %s111 = scalar_lea.hbm %s0, %s110
          %s113 = sshll.u32 %s111, 4
          %s114 = int_to_ptr.hbm [resolvable:$true] %s113
          %s115 = sshll.u32 %s106, 4
          %s116 = int_to_ptr.vmem [resolvable:$true] %s115
          %118 = dma.hbm_to_vmem [thread:$0]  %s114, 128, %s116, %s103
        $region20: #{tpu_custom_call.1} parent=15 // pred_fallthru
          _
      $region16: #{tpu_custom_call.1} parent=5 // pred_fallthru
        _
      %p119 = scmp.le.s32.totalorder 1, %s12
      %p120 = scmp.lt.s32.totalorder %s12, 3
      %p121 = pnand %p119, %p120
      %p122 = pneg %p121
      // Predicated region
      $region21: #{tpu_custom_call.1} parent=5 // pred_check
        _
      $region22: #{tpu_custom_call.1} parent=5 // pred_check_branch
        %124 = sbr.rel (%p121) target = $region24
      $region23: #{tpu_custom_call.1} parent=5 // pred_region
        %s125 = ssub.s32 %s12, 1
        %s126 = sand.u32 %s25, 1
        %s127 = scalar_lea.sflag [#allocation3], %s126
        %s128 = sand.u32 %s25, 1
        %s129 = smul.addr %s128, 8
        %s130 = scalar_lea.vmem [#allocation2], %s129
        // Predicated region
        $region25: #{tpu_custom_call.1} parent=23 // pred_check
          %p131 = pneg %p38
        $region26: #{tpu_custom_call.1} parent=23 // pred_check_branch
          %133 = sbr.rel (%p131) target = $region28
        $region27: #{tpu_custom_call.1} parent=23 // pred_region
          %135 = dma.done %s127, 128
        $region28: #{tpu_custom_call.1} parent=23 // pred_fallthru
          _
        %s136 = sand.u32 %s25, 1
        %s137 = scalar_lea.sflag [#allocation3], %s136
        %s138 = sand.u32 %s25, 1
        %s139 = smul.addr %s138, 8
        %s140 = scalar_lea.vmem [#allocation2], %s139
        %p141 = pneg %p38
        %p142 = pneg %p35
        %p143 = pneg %p59
        %p144 = pneg %p56
        %p145 = pneg %p80
        %p146 = pneg %p77
        %p147 = scmp.eq.s32.totalorder %s17, 0
        // Predicated region
        $region29: #{tpu_custom_call.1} parent=23 // pred_check
          %p148 = pneg %p147
        $region30: #{tpu_custom_call.1} parent=23 // pred_check_branch
          %150 = sbr.rel (%p148) target = $region32
        $region31: #{tpu_custom_call.1} parent=23 // pred_region
          %vm151 = vcmask 3072
          %152 = vst.msk [vmem:[%s1] sm:$0xf] %vm151, 0.0
          %153 = vst.msk [vmem:[%s2] sm:$0xf] %vm151, 0.0
        $region32: #{tpu_custom_call.1} parent=23 // pred_fallthru
          _
        %v154 = vld [vmem:[%s130] sm:$0xff]
        %v155 = vld [vmem:[%s1] sm:$0xf]
        %157 = vst [vmem:[#allocation1] ss:$2 sm:$0xff] %v154
        %v158 = vld.sshfl [vmem:[#allocation1] sm:$0xff pattern:$0x75316420]
        %v159 = vld.sshfl [vmem:[#allocation1 + $0x8] sm:$0xff pattern:$0x75316420]
        %vm162 = vcmask 1043456
        %v163 = vsel %vm162, %v158, 0.0
        %v164 = vsel %vm162, %v159, 0.0
        %v165 = vadd.f32 %v163, %v164
        %166 = vadd.xlane.f32.xlu0 %v165
        %v167 = vpop.xlane.xlu0 %166
        %v168 = vadd.f32 %v155, %v167
        %vm169 = vcmask 3072
        %170 = vst.msk [vmem:[%s1] sm:$0xf] %vm169, %v168
        %v171 = vld [vmem:[%s2] sm:$0xf]
        %v172 = vmul.f32 %v154, %v154
        %174 = vst [vmem:[#allocation1] ss:$2 sm:$0xff] %v172
        %v175 = vld.sshfl [vmem:[#allocation1] sm:$0xff pattern:$0x75316420]
        %v176 = vld.sshfl [vmem:[#allocation1 + $0x8] sm:$0xff pattern:$0x75316420]
        %v179 = vsel %vm162, %v175, 0.0
        %v180 = vsel %vm162, %v176, 0.0
        %v181 = vadd.f32 %v179, %v180
        %182 = vadd.xlane.f32.xlu0 %v181
        %v183 = vpop.xlane.xlu0 %182
        %v184 = vadd.f32 %v171, %v183
        %185 = vst.msk [vmem:[%s2] sm:$0xf] %vm169, %v184
        // Predicated region
        $region33: #{tpu_custom_call.1} parent=23 // pred_check
          %p186 = pneg %p56
        $region34: #{tpu_custom_call.1} parent=23 // pred_check_branch
          %188 = sbr.rel (%p186) target = $region36
        $region35: #{tpu_custom_call.1} parent=23 // pred_region
          _
        $region36: #{tpu_custom_call.1} parent=23 // pred_fallthru
          _
        // Predicated region
        $region37: #{tpu_custom_call.1} parent=23 // pred_check
          %p189 = pneg %p77
        $region38: #{tpu_custom_call.1} parent=23 // pred_check_branch
          %191 = sbr.rel (%p189) target = $region40
        $region39: #{tpu_custom_call.1} parent=23 // pred_region
          _
        $region40: #{tpu_custom_call.1} parent=23 // pred_fallthru
          _
        // Predicated region
        $region41: #{tpu_custom_call.1} parent=23 // pred_check
          %p192 = pneg %p56
        $region42: #{tpu_custom_call.1} parent=23 // pred_check_branch
          %194 = sbr.rel (%p192) target = $region44
        $region43: #{tpu_custom_call.1} parent=23 // pred_region
          _
        $region44: #{tpu_custom_call.1} parent=23 // pred_fallthru
          _
        // Predicated region
        $region45: #{tpu_custom_call.1} parent=23 // pred_check
          %p195 = pneg %p77
        $region46: #{tpu_custom_call.1} parent=23 // pred_check_branch
          %197 = sbr.rel (%p195) target = $region48
        $region47: #{tpu_custom_call.1} parent=23 // pred_region
          _
        $region48: #{tpu_custom_call.1} parent=23 // pred_fallthru
          _
      $region24: #{tpu_custom_call.1} parent=5 // pred_fallthru
        _
      %p198 = scmp.le.s32.totalorder 2, %s12
      // Predicated region
      $region49: #{tpu_custom_call.1} parent=5 // pred_check
        %p199 = pneg %p198
      $region50: #{tpu_custom_call.1} parent=5 // pred_check_branch
        %201 = sbr.rel (%p199) target = $region52
      $region51: #{tpu_custom_call.1} parent=5 // pred_region
        %s202 = ssub.s32 %s12, 2
      $region52: #{tpu_custom_call.1} parent=5 // pred_fallthru
        _
    $region6: #{tpu_custom_call.1} parent=1 // loop_footer
      %s16 = sadd.s32 1, %s12
    $region7: #{tpu_custom_call.1} parent=1 // loop_footer_branch
      %11 = sbr.rel target = $region3
    $region8: #{tpu_custom_call.1} parent=1 // loop_exit
      _
    %203 = vsyncpa [#allocation3], 1
    %s204 = scalar_lea.sflag [#allocation3], 1
    %205 = vsyncpa %s204, 1

</llo_original>
